<compile_context>
chip_gen: v6e
topology: v6e:2x2x1
jax: 0.10.0
libtpu: 0.0.40
codegen_flags: <defaults>
</compile_context>

<pallas_src>
import functools

import jax
import jax.numpy as jnp
from jax.experimental import pallas as pl
from jax.experimental.pallas import tpu as pltpu


def _round_up(x, m):
    return ((x + m - 1) // m) * m


def _round_down(x, m):
    return (x // m) * m


# ----------------------------------------------------------------------------
# Pallas kernel: out = sum_i (x_i @ w_i) + b   (f32 accumulate, cast on store)
# ----------------------------------------------------------------------------
def _make_prefc_kernel(n_inputs):
    def kernel(*refs):
        x_refs = refs[:n_inputs]
        w_refs = refs[n_inputs:2 * n_inputs]
        b_ref = refs[2 * n_inputs]
        o_ref = refs[2 * n_inputs + 1]
        acc = jnp.dot(x_refs[0][...], w_refs[0][...],
                      preferred_element_type=jnp.float32)
        for x_ref, w_ref in zip(x_refs[1:], w_refs[1:]):
            acc = acc + jnp.dot(x_ref[...], w_ref[...],
                                preferred_element_type=jnp.float32)
        # Row-wise epilogue only: garbage rows in the masked tail block must
        # never feed a cross-row reduction.
        o_ref[...] = (acc + b_ref[...]).astype(o_ref.dtype)
    return kernel


def _block_diag(w, k):
    """k-fold block-diagonal replication of w (used for lane-dense packing)."""
    if k == 1:
        return w
    return jnp.kron(jnp.eye(k, dtype=w.dtype), w)


def _choose_tile_tokens(T, k, bytes_per_token, *, target_tokens=2048,
                        tile_budget_bytes=16 * 1024 * 1024):
    """Token tile: as large as the VMEM budget allows (amortize the ~0.35us
    per-grid-step cost), capped so the grid keeps >= min(4, possible) blocks
    (v7x megacore sharding), aligned to 8 sublanes * k packed tokens."""
    align = 8 * k
    t_up = _round_up(T, align)
    cap = max(align, _round_down(tile_budget_bytes // max(bytes_per_token, 1), align))
    tm = min(target_tokens, cap, t_up)
    desired_blocks = min(4, pl.cdiv(T, align))
    if desired_blocks > 1:
        tm = min(tm, max(align, _round_down(T // desired_blocks, align)))
    return max(align, tm)


def prefc_pallas(inputs, b, *, out_dtype=jnp.bfloat16, target_tile_tokens=2048):
    """inputs: list of (x_i, w_i) with x_i (T, K_i), w_i (K_i, D); b: (D,).
    Returns sum_i x_i @ w_i + b with f32 accumulation, stored as out_dtype.

    Input/weight dtypes are used as given (cast at the data source, not here,
    to avoid an extra HBM pass over the token matrix).
    """
    T = inputs[0][0].shape[0]
    D = inputs[0][1].shape[1]
    out_isz = jnp.dtype(out_dtype).itemsize
    n = len(inputs)

    # --- lane-dense packing for narrow D: view k tokens per output row -------
    k = 1
    if D < 128 and 128 % D == 0 and T % (128 // D) == 0:
        k = 128 // D
    Tp, Dp = T // k, k * D

    xs, ws = [], []
    for x, w in inputs:
        xs.append(x.reshape(Tp, k * x.shape[1]))   # free view of contiguous rows
        ws.append(_block_diag(w, k))               # small, resident in VMEM
    b_p = jnp.tile(b.astype(jnp.float32).reshape(1, D), (1, k))

    # --- tile selection under a generation-safe VMEM budget ------------------
    bytes_per_token = sum(2 * x.shape[1] * x.dtype.itemsize for x, _ in inputs)
    bytes_per_token += 2 * D * out_isz + D * 4     # out double-buffer + f32 acc
    tm = _choose_tile_tokens(T, k, bytes_per_token,
                             target_tokens=target_tile_tokens)
    tmp = tm // k
    grid = (pl.cdiv(Tp, tmp),)

    weight_bytes = sum(2 * w.size * w.dtype.itemsize for w in ws) + 2 * Dp * 4
    est_vmem = tm * bytes_per_token + weight_bytes
    vmem_limit = int(min(56 * 1024 * 1024, max(32 * 1024 * 1024, 2 * est_vmem)))

    cost = pl.CostEstimate(
        flops=2 * Tp * Dp * sum(x.shape[1] for x in xs),
        transcendentals=0,
        bytes_accessed=(sum(Tp * x.shape[1] * x.dtype.itemsize for x in xs)
                        + sum(w.size * w.dtype.itemsize for w in ws)
                        + Dp * 4 + Tp * Dp * out_isz),
    )

    in_specs = (
        [pl.BlockSpec((tmp, x.shape[1]), lambda i: (i, 0)) for x in xs]
        + [pl.BlockSpec(w.shape, lambda i: (0, 0)) for w in ws]
        + [pl.BlockSpec((1, Dp), lambda i: (0, 0))]
    )

    out = pl.pallas_call(
        _make_prefc_kernel(n),
        out_shape=jax.ShapeDtypeStruct((Tp, Dp), out_dtype),
        grid_spec=pl.GridSpec(
            grid=grid,
            in_specs=in_specs,
            out_specs=pl.BlockSpec((tmp, Dp), lambda i: (i, 0)),
        ),
        compiler_params=pltpu.CompilerParams(
            dimension_semantics=("parallel",),
            vmem_limit_bytes=vmem_limit),
        cost_estimate=cost,
    )(*xs, *ws, b_p)
    return out.reshape(T, D)


# ----------------------------------------------------------------------------
# Glue: poses -> rays (channel-first), patchify (single physical transpose)
# ----------------------------------------------------------------------------
def poses_to_rays_cf(poses, H, W, focals):
    """poses: (B, N, 3, 4) camera-to-world, focals: (B, N).
    Returns (origins (B, N, 3), rays_d (B, N, 3, H, W)).  rays_d is built
    channel-first directly; origins are NOT broadcast over (H, W) since they
    are constant per view."""
    # TODO(synk): original repo's exact pixel-center / sign convention not
    # given; this is the standard NeRF get_rays convention.
    ys, xs = jnp.meshgrid(jnp.arange(H, dtype=jnp.float32),
                          jnp.arange(W, dtype=jnp.float32), indexing="ij")
    f = focals[..., None, None]                              # (B, N, 1, 1)
    dx = (xs - W * 0.5) / f                                  # (B, N, H, W)
    dy = -(ys - H * 0.5) / f
    dz = -jnp.ones_like(dx)
    dirs = jnp.stack([dx, dy, dz], axis=2)                   # (B, N, 3, H, W)
    rot = poses[..., :3, :3]                                 # (B, N, 3, 3)
    rays_d = jnp.einsum("bnij,bnjhw->bnihw", rot, dirs)      # (B, N, 3, H, W)
    return poses[..., :3, 3], rays_d


def patchify_tokens(x, patch_size, padding):
    """x: (B, N, C, H, W) -> (B*N*L, C*ph*pw), matching F.unfold's
    (c, kh, kw)-major feature order and row-major location order, flattened
    over (b, n, l).  One physical transpose; reshapes fuse into that copy."""
    ph, pw = patch_size
    padh, padw = padding
    if padh or padw:
        x = jnp.pad(x, ((0, 0), (0, 0), (0, 0), (padh, padh), (padw, padw)))
    B, N, C, H, W = x.shape
    gh, gw = H // ph, W // pw
    x = x.reshape(B, N, C, gh, ph, gw, pw)
    x = x.transpose(0, 1, 3, 5, 2, 4, 6)            # (B, N, gh, gw, C, ph, pw)
    return x.reshape(B * N * gh * gw, C * ph * pw), gh * gw


# ----------------------------------------------------------------------------
# NvsTokenizer init + forward
# ----------------------------------------------------------------------------
def init_nvs_tokenizer(key, input_size, patch_size, dim, padding=0,
                       img_channels=3):
    if isinstance(input_size, int):
        input_size = (input_size, input_size)
    if isinstance(patch_size, int):
        patch_size = (patch_size, patch_size)
    if isinstance(padding, int):
        padding = (padding, padding)
    in_features = patch_size[0] * patch_size[1] * (img_channels + 3 + 3)
    kw, kb = jax.random.split(key)
    bound = 1.0 / jnp.sqrt(in_features)
    params = {
        # stored transposed: (in_features, dim) so the kernel does x @ w + b
        "prefc_w": jax.random.uniform(kw, (in_features, dim), jnp.float32,
                                      -bound, bound),
        "prefc_b": jax.random.uniform(kb, (dim,), jnp.float32, -bound, bound),
    }
    cfg = {
        "patch_size": patch_size,
        "padding": padding,
        "grid_shape": (
            (input_size[0] + padding[0] * 2) // patch_size[0],
            (input_size[1] + padding[1] * 2) // patch_size[1],
        ),
    }
    return params, cfg


@functools.partial(jax.jit, static_argnames=("patch_size", "padding", "out_dtype"))
def nvs_tokenizer_forward(params, imgs, poses, focals, *, patch_size, padding,
                          out_dtype=jnp.bfloat16):
    """imgs: (B, N, 3, H, W), poses: (B, N, 3, 4), focals: (B, N).
    Returns tokens of shape (B, N*L, dim) in out_dtype."""
    B, N, C_img, H, W = imgs.shape
    ph, pw = patch_size
    pp = ph * pw
    w, b = params["prefc_w"], params["prefc_b"]
    D = w.shape[1]
    origins, rays_d = poses_to_rays_cf(poses, H, W, focals)

    # prefc weight rows follow F.unfold's (c, kh, kw)-major order with the
    # channel groups [imgs, rays_o, rays_d].
    w_img = w[:C_img * pp]
    w_o = w[C_img * pp:(C_img + 3) * pp]
    w_d = w[(C_img + 3) * pp:]

    if padding == (0, 0):
        # rays_o is constant per (b, n) view, so its 3*ph*pw token columns are
        # redundant: fold them into a 3-feature per-token contraction (kept in
        # f32 so scene translations are not bf16-quantized), summing the
        # repeated patch positions into the weight.  Saves ~1/3 of token
        # bytes, the (B,N,3,H,W) broadcast, and ~1/3 of patchify traffic.
        tok_img, L = patchify_tokens(imgs.astype(jnp.bfloat16), patch_size, padding)
        tok_d, _ = patchify_tokens(rays_d.astype(jnp.bfloat16), patch_size, padding)
        T = tok_img.shape[0]
        x_o = jnp.broadcast_to(origins.reshape(B * N, 1, 3),
                               (B * N, L, 3)).reshape(T, 3).astype(jnp.float32)
        w_o_fold = w_o.reshape(3, pp, D).sum(axis=1)          # (3, D), f32
        pairs = [(tok_img, w_img.astype(jnp.bfloat16)),
                 (tok_d, w_d.astype(jnp.bfloat16)),
                 (x_o, w_o_fold)]
    else:
        # TODO(synk): with spatial padding, F.unfold zero-pads the rays_o
        # channels at border patches, so the per-view fold is invalid; fall
        # back to the full channel concat (still cast bf16 before the copies).
        ro = jnp.broadcast_to(origins[..., None, None], rays_d.shape)
        x = jnp.concatenate([imgs.astype(jnp.bfloat16), ro.astype(jnp.bfloat16),
                             rays_d.astype(jnp.bfloat16)], axis=2)
        tokens, L = patchify_tokens(x, patch_size, padding)
        pairs = [(tokens, w.astype(jnp.bfloat16))]

    out = prefc_pallas(pairs, b, out_dtype=out_dtype)
    return out.reshape(B, N * L, D)


# ----------------------------------------------------------------------------
if __name__ == "__main__":
    key = jax.random.PRNGKey(0)
    kp, k_img, k_pose, k_foc, kx, kxe, kw2, kwe2, kb2 = jax.random.split(key, 9)

    # Small config: 16x16 images, 4x4 patches, dim=32, 2 batch x 2 support views
    input_size, patch_size, dim, padding = 16, 4, 32, 0
    B, N, H, W = 2, 2, 16, 16

    params, cfg = init_nvs_tokenizer(kp, input_size, patch_size, dim, padding)

    imgs = jax.random.normal(k_img, (B, N, 3, H, W), jnp.float32)
    # camera-to-world poses: identity rotation + random translation
    rot = jnp.broadcast_to(jnp.eye(3, dtype=jnp.float32), (B, N, 3, 3))
    trans = jax.random.normal(k_pose, (B, N, 3, 1), jnp.float32)
    poses = jnp.concatenate([rot, trans], axis=-1)            # (B, N, 3, 4)
    focals = 10.0 + jax.random.uniform(k_foc, (B, N), jnp.float32)

    out = nvs_tokenizer_forward(
        params, imgs, poses, focals,
        patch_size=cfg["patch_size"], padding=cfg["padding"])
    out = jax.block_until_ready(out)

    # ---- Reference: independent unfold path (mimics F.unfold), full f32 ----
    def unfold_nchw(x, patch, pad):
        ph, pw = patch
        padh, padw = pad
        if padh or padw:
            x = jnp.pad(x, ((0, 0), (0, 0), (padh, padh), (padw, padw)))
        BN, C, Hh, Ww = x.shape
        gh, gw = Hh // ph, Ww // pw
        x = x.reshape(BN, C, gh, ph, gw, pw).transpose(0, 1, 3, 5, 2, 4)
        return x.reshape(BN, C * ph * pw, gh * gw)

    origins, rays_d = poses_to_rays_cf(poses, H, W, focals)
    ro = jnp.broadcast_to(origins[..., None, None], rays_d.shape)
    xr = jnp.concatenate([imgs, ro, rays_d], axis=2).reshape(B * N, 9, H, W)
    xr = unfold_nchw(xr, cfg["patch_size"], cfg["padding"])
    _, ppd, L = xr.shape
    xr = xr.reshape(B, N, ppd, L).transpose(0, 1, 3, 2).reshape(B, N * L, ppd)
    ref_f32 = xr @ params["prefc_w"] + params["prefc_b"]

    assert out.shape == (B, N * cfg["grid_shape"][0] * cfg["grid_shape"][1], dim)
    assert out.dtype == jnp.dtype(jnp.bfloat16)
    assert jnp.allclose(out.astype(jnp.float32), ref_f32, atol=5e-2, rtol=5e-2)

    # ---- Extra check: k=1 path (D >= 128), multi-block grid, partial tail ---
    T2, K2, E2, D2 = 200, 96, 3, 256
    x2 = jax.random.normal(kx, (T2, K2), jnp.float32).astype(jnp.bfloat16)
    xe2 = jax.random.normal(kxe, (T2, E2), jnp.float32)
    w2 = (jax.random.normal(kw2, (K2, D2), jnp.float32) * 0.05).astype(jnp.bfloat16)
    we2 = jax.random.normal(kwe2, (E2, D2), jnp.float32) * 0.05
    b2 = jax.random.normal(kb2, (D2,), jnp.float32)
    o2 = jax.block_until_ready(
        prefc_pallas([(x2, w2), (xe2, we2)], b2, out_dtype=jnp.bfloat16))
    r2 = (jnp.dot(x2, w2, preferred_element_type=jnp.float32)
          + jnp.dot(xe2, we2, preferred_element_type=jnp.float32) + b2)
    assert jnp.allclose(o2.astype(jnp.float32), r2, atol=2e-2, rtol=2e-2)

    print("KERNEL_OK")
</pallas_src>

<mosaic_0001>
module attributes {stable_mosaic.version = 11 : i64} {
  func.func @kernel(%arg0: i32, %arg1: memref<8x192xbf16, #tpu.memory_space<vmem>>, %arg2: memref<8x192xbf16, #tpu.memory_space<vmem>>, %arg3: memref<8x12xf32, #tpu.memory_space<vmem>>, %arg4: memref<192x128xbf16, #tpu.memory_space<vmem>>, %arg5: memref<192x128xbf16, #tpu.memory_space<vmem>>, %arg6: memref<12x128xf32, #tpu.memory_space<vmem>>, %arg7: memref<1x128xf32, #tpu.memory_space<vmem>>, %arg8: memref<8x128xbf16, #tpu.memory_space<vmem>>) attributes {dimension_semantics = [#tpu.dimension_semantics<parallel>], iteration_bounds = array<i64: 2>, scalar_prefetch = 0 : i64, scratch_operands = 0 : i64, tpu.core_type = #tpu.core_type<tc>, window_params = [{transform_indices = @transform_0, window_bounds = array<i64: 8, 192>}, {transform_indices = @transform_1, window_bounds = array<i64: 8, 192>}, {transform_indices = @transform_2, window_bounds = array<i64: 8, 12>}, {pipeline_mode = #tpu.pipeline_mode<synchronous>, transform_indices = @transform_3, window_bounds = array<i64: 192, 128>}, {pipeline_mode = #tpu.pipeline_mode<synchronous>, transform_indices = @transform_4, window_bounds = array<i64: 192, 128>}, {pipeline_mode = #tpu.pipeline_mode<synchronous>, transform_indices = @transform_5, window_bounds = array<i64: 12, 128>}, {pipeline_mode = #tpu.pipeline_mode<synchronous>, transform_indices = @transform_6, window_bounds = array<i64: 1, 128>}, {transform_indices = @transform_7, window_bounds = array<i64: 8, 128>}]} {
    %c0 = arith.constant 0 : index
    %c0_0 = arith.constant 0 : index
    %0 = vector.load %arg1[%c0, %c0_0] : memref<8x192xbf16, #tpu.memory_space<vmem>>, vector<8x192xbf16>
    %c0_1 = arith.constant 0 : index
    %c0_2 = arith.constant 0 : index
    %1 = vector.load %arg4[%c0_1, %c0_2] : memref<192x128xbf16, #tpu.memory_space<vmem>>, vector<192x128xbf16>
    %cst = arith.constant dense<0.000000e+00> : vector<8x128xf32>
    %2 = tpu.matmul %0, %1, %cst {dimension_numbers = #tpu.dot_dimension_numbers<[1], [0], [0], [1], [0, 0, 1, 1], [], []>} : vector<8x192xbf16>, vector<192x128xbf16>, vector<8x128xf32> -> vector<8x128xf32>
    %c0_3 = arith.constant 0 : index
    %c0_4 = arith.constant 0 : index
    %3 = vector.load %arg2[%c0_3, %c0_4] : memref<8x192xbf16, #tpu.memory_space<vmem>>, vector<8x192xbf16>
    %c0_5 = arith.constant 0 : index
    %c0_6 = arith.constant 0 : index
    %4 = vector.load %arg5[%c0_5, %c0_6] : memref<192x128xbf16, #tpu.memory_space<vmem>>, vector<192x128xbf16>
    %cst_7 = arith.constant dense<0.000000e+00> : vector<8x128xf32>
    %5 = tpu.matmul %3, %4, %cst_7 {dimension_numbers = #tpu.dot_dimension_numbers<[1], [0], [0], [1], [0, 0, 1, 1], [], []>} : vector<8x192xbf16>, vector<192x128xbf16>, vector<8x128xf32> -> vector<8x128xf32>
    %6 = arith.addf %2, %5 : vector<8x128xf32>
    %c0_8 = arith.constant 0 : index
    %c0_9 = arith.constant 0 : index
    %7 = vector.load %arg3[%c0_8, %c0_9] : memref<8x12xf32, #tpu.memory_space<vmem>>, vector<8x12xf32>
    %c0_10 = arith.constant 0 : index
    %c0_11 = arith.constant 0 : index
    %8 = vector.load %arg6[%c0_10, %c0_11] : memref<12x128xf32, #tpu.memory_space<vmem>>, vector<12x128xf32>
    %cst_12 = arith.constant dense<0.000000e+00> : vector<8x128xf32>
    %9 = tpu.matmul %7, %8, %cst_12 {dimension_numbers = #tpu.dot_dimension_numbers<[1], [0], [0], [1], [0, 0, 1, 1], [], []>} : vector<8x12xf32>, vector<12x128xf32>, vector<8x128xf32> -> vector<8x128xf32>
    %10 = arith.addf %6, %9 : vector<8x128xf32>
    %c0_13 = arith.constant 0 : index
    %c0_14 = arith.constant 0 : index
    %11 = vector.load %arg7[%c0_13, %c0_14] : memref<1x128xf32, #tpu.memory_space<vmem>>, vector<1x128xf32>
    %12 = vector.broadcast %11 : vector<1x128xf32> to vector<8x128xf32>
    %13 = arith.addf %10, %12 : vector<8x128xf32>
    %14 = arith.truncf %13 : vector<8x128xf32> to vector<8x128xbf16>
    %c0_15 = arith.constant 0 : index
    %c0_16 = arith.constant 0 : index
    %15 = vector.load %arg8[%c0_15, %c0_16] : memref<8x128xbf16, #tpu.memory_space<vmem>>, vector<8x128xbf16>
    tpu.vector_store %arg8[%c0_15, %c0_16], %14 {strides = array<i32>} : memref<8x128xbf16, #tpu.memory_space<vmem>>, vector<8x128xbf16>,
    return
  }
  func.func @transform_0(%arg0: i32) -> (i32, i32) {
    %c0_i32 = arith.constant 0 : i32
    %c0_i32_0 = arith.constant 0 : i32
    return %arg0, %c0_i32 : i32, i32
  }
  func.func @transform_1(%arg0: i32) -> (i32, i32) {
    %c0_i32 = arith.constant 0 : i32
    %c0_i32_0 = arith.constant 0 : i32
    return %arg0, %c0_i32 : i32, i32
  }
  func.func @transform_2(%arg0: i32) -> (i32, i32) {
    %c0_i32 = arith.constant 0 : i32
    %c0_i32_0 = arith.constant 0 : i32
    return %arg0, %c0_i32 : i32, i32
  }
  func.func @transform_3(%arg0: i32) -> (i32, i32) {
    %c0_i32 = arith.constant 0 : i32
    %c0_i32_0 = arith.constant 0 : i32
    %c0_i32_1 = arith.constant 0 : i32
    return %c0_i32, %c0_i32_0 : i32, i32
  }
  func.func @transform_4(%arg0: i32) -> (i32, i32) {
    %c0_i32 = arith.constant 0 : i32
    %c0_i32_0 = arith.constant 0 : i32
    %c0_i32_1 = arith.constant 0 : i32
    return %c0_i32, %c0_i32_0 : i32, i32
  }
  func.func @transform_5(%arg0: i32) -> (i32, i32) {
    %c0_i32 = arith.constant 0 : i32
    %c0_i32_0 = arith.constant 0 : i32
    %c0_i32_1 = arith.constant 0 : i32
    return %c0_i32, %c0_i32_0 : i32, i32
  }
  func.func @transform_6(%arg0: i32) -> (i32, i32) {
    %c0_i32 = arith.constant 0 : i32
    %c0_i32_0 = arith.constant 0 : i32
    %c0_i32_1 = arith.constant 0 : i32
    return %c0_i32, %c0_i32_0 : i32, i32
  }
  func.func @transform_7(%arg0: i32) -> (i32, i32) {
    %c0_i32 = arith.constant 0 : i32
    %c0_i32_0 = arith.constant 0 : i32
    return %arg0, %c0_i32 : i32, i32
  }
}

</mosaic_0001>

<llo_original>
// kernel: nvs_tokenizer_forward.1
$region0: #{nvs_tokenizer_forward.1}
  #allocation0 [shape = 'u32[]', space=smem, size = 0x4, offset = 0x4, fixed_abs, tag = 'smem constant byte address 0x4 - core index']
  #allocation1 [shape = 'u32[144,128]{1,0:T(1,128)}', space=vmem, size = 0x12000, scoped, tag = 'internal scratch']
  %s0 = inlined_call_operand.vmem [shape: bf16[16,192], index: 0, kind: input, shape index: {}]
  %s1 = inlined_call_operand.vmem [shape: bf16[16,192], index: 1, kind: input, shape index: {}]
  %s2 = inlined_call_operand.vmem [shape: f32[16,12], index: 2, kind: input, shape index: {}]
  %s3 = inlined_call_operand.vmem [shape: bf16[192,128], index: 3, kind: input, shape index: {}]
  %s4 = inlined_call_operand.vmem [shape: bf16[192,128], index: 4, kind: input, shape index: {}]
  %s5 = inlined_call_operand.vmem [shape: f32[12,128], index: 5, kind: input, shape index: {}]
  %s6 = inlined_call_operand.vmem [shape: f32[1,128], index: 6, kind: input, shape index: {}]
  %s7 = inlined_call_operand.vmem [shape: bf16[16,128], index: 7, kind: output, shape index: {}]
  %s8 = sld [smem:[#allocation0]]
  $region61: #{nvs_tokenizer_forward.1} parent=0
    _
  %s10 = ssub.s32 1, %s8
  %s11 = scalar_select 0, %s10, %s8
  loop: start=0, step=1, limit=4
  $region2: #{nvs_tokenizer_forward.1} parent=0 // loop_pre_header
    _
  $region3: #{nvs_tokenizer_forward.1} parent=0 // loop_header
    %s13 = sphi 0, %s17
    %p14 = scmp.ge.s32.totalorder %s13, 4
    %s23 = sphi 0, %s25
    %s26 = sphi 0, %s23
    %s27 = sphi 0, %s26
    %s43 = sphi 0, %s27
    %s49 = sphi 0, %s51
    %s52 = sphi 0, %s49
    %s53 = sphi 0, %s52
    %s69 = sphi 0, %s53
    %s75 = sphi 0, %s77
    %s78 = sphi 0, %s75
    %s79 = sphi 0, %s78
    %s95 = sphi 0, %s79
    %s99 = sphi 0, %s99
    %s101 = sphi 0, %s99
    %s102 = sphi 0, %s101
    %s116 = sphi 0, %s102
    %s120 = sphi 0, %s120
    %s122 = sphi 0, %s120
    %s123 = sphi 0, %s122
    %s137 = sphi 0, %s123
    %s141 = sphi 0, %s141
    %s143 = sphi 0, %s141
    %s144 = sphi 0, %s143
    %s158 = sphi 0, %s144
    %s162 = sphi 0, %s162
    %s164 = sphi 0, %s162
    %s165 = sphi 0, %s164
    %s179 = sphi 0, %s165
    %s185 = sphi 0, %s187
    %s188 = sphi 0, %s185
    %s189 = sphi 0, %s188
    %s205 = sphi 0, %s189
  $region4: #{nvs_tokenizer_forward.1} parent=0 // loop_header_branch
    %16 = sbr.rel (%p14) target = $region8
  $region5: #{nvs_tokenizer_forward.1} parent=0 // loop_body
    %s18 = ssub.s32 %s13, 1
    %s19 = ssub.s32 %s13, 2
    %s20 = sadd.s32 %s13, 1
    %s21 = ssub.s32 %s13, %s20
    %p22 = scmp.eq.s32.totalorder %s21, 0
    %s24 = sadd.s32 %s23, 1
    %s25 = scalar_select %p22, %s23, %s24
    %p28 = pneg %p22
    %p29 = scmp.eq.s32.totalorder %s13, 1
    %p30 = por %p28, %p29
    %p31 = scmp.ne.s32.totalorder %s23, %s26
    %p32 = scmp.eq.s32.totalorder %s13, 0
    %p33 = por %p31, %p32
    %p34 = scmp.ne.s32.totalorder %s23, %s26
    %p35 = scmp.eq.s32.totalorder %s18, 1
    %p36 = por %p34, %p35
    %p37 = scmp.ne.s32.totalorder %s26, %s27
    %p38 = scmp.eq.s32.totalorder %s18, 0
    %p39 = por %p37, %p38
    %p40 = scmp.ne.s32.totalorder %s26, %s27
    %p41 = scmp.eq.s32.totalorder %s19, 1
    %p42 = por %p40, %p41
    %p44 = scmp.ne.s32.totalorder %s27, %s43
    %p45 = scmp.eq.s32.totalorder %s19, 0
    %p46 = por %p44, %p45
    %s47 = ssub.s32 %s13, %s20
    %p48 = scmp.eq.s32.totalorder %s47, 0
    %s50 = sadd.s32 %s49, 1
    %s51 = scalar_select %p48, %s49, %s50
    %p54 = pneg %p48
    %p55 = scmp.eq.s32.totalorder %s13, 1
    %p56 = por %p54, %p55
    %p57 = scmp.ne.s32.totalorder %s49, %s52
    %p58 = scmp.eq.s32.totalorder %s13, 0
    %p59 = por %p57, %p58
    %p60 = scmp.ne.s32.totalorder %s49, %s52
    %p61 = scmp.eq.s32.totalorder %s18, 1
    %p62 = por %p60, %p61
    %p63 = scmp.ne.s32.totalorder %s52, %s53
    %p64 = scmp.eq.s32.totalorder %s18, 0
    %p65 = por %p63, %p64
    %p66 = scmp.ne.s32.totalorder %s52, %s53
    %p67 = scmp.eq.s32.totalorder %s19, 1
    %p68 = por %p66, %p67
    %p70 = scmp.ne.s32.totalorder %s53, %s69
    %p71 = scmp.eq.s32.totalorder %s19, 0
    %p72 = por %p70, %p71
    %s73 = ssub.s32 %s13, %s20
    %p74 = scmp.eq.s32.totalorder %s73, 0
    %s76 = sadd.s32 %s75, 1
    %s77 = scalar_select %p74, %s75, %s76
    %p80 = pneg %p74
    %p81 = scmp.eq.s32.totalorder %s13, 1
    %p82 = por %p80, %p81
    %p83 = scmp.ne.s32.totalorder %s75, %s78
    %p84 = scmp.eq.s32.totalorder %s13, 0
    %p85 = por %p83, %p84
    %p86 = scmp.ne.s32.totalorder %s75, %s78
    %p87 = scmp.eq.s32.totalorder %s18, 1
    %p88 = por %p86, %p87
    %p89 = scmp.ne.s32.totalorder %s78, %s79
    %p90 = scmp.eq.s32.totalorder %s18, 0
    %p91 = por %p89, %p90
    %p92 = scmp.ne.s32.totalorder %s78, %s79
    %p93 = scmp.eq.s32.totalorder %s19, 1
    %p94 = por %p92, %p93
    %p96 = scmp.ne.s32.totalorder %s79, %s95
    %p97 = scmp.eq.s32.totalorder %s19, 0
    %p98 = por %p96, %p97
    %s100 = sadd.s32 %s99, 1
    %p103 = scmp.eq.s32.totalorder %s13, 1
    %p104 = scmp.ne.s32.totalorder %s99, %s101
    %p105 = scmp.eq.s32.totalorder %s13, 0
    %p106 = por %p104, %p105
    %p107 = scmp.ne.s32.totalorder %s99, %s101
    %p108 = scmp.eq.s32.totalorder %s18, 1
    %p109 = por %p107, %p108
    %p110 = scmp.ne.s32.totalorder %s101, %s102
    %p111 = scmp.eq.s32.totalorder %s18, 0
    %p112 = por %p110, %p111
    %p113 = scmp.ne.s32.totalorder %s101, %s102
    %p114 = scmp.eq.s32.totalorder %s19, 1
    %p115 = por %p113, %p114
    %p117 = scmp.ne.s32.totalorder %s102, %s116
    %p118 = scmp.eq.s32.totalorder %s19, 0
    %p119 = por %p117, %p118
    %s121 = sadd.s32 %s120, 1
    %p124 = scmp.eq.s32.totalorder %s13, 1
    %p125 = scmp.ne.s32.totalorder %s120, %s122
    %p126 = scmp.eq.s32.totalorder %s13, 0
    %p127 = por %p125, %p126
    %p128 = scmp.ne.s32.totalorder %s120, %s122
    %p129 = scmp.eq.s32.totalorder %s18, 1
    %p130 = por %p128, %p129
    %p131 = scmp.ne.s32.totalorder %s122, %s123
    %p132 = scmp.eq.s32.totalorder %s18, 0
    %p133 = por %p131, %p132
    %p134 = scmp.ne.s32.totalorder %s122, %s123
    %p135 = scmp.eq.s32.totalorder %s19, 1
    %p136 = por %p134, %p135
    %p138 = scmp.ne.s32.totalorder %s123, %s137
    %p139 = scmp.eq.s32.totalorder %s19, 0
    %p140 = por %p138, %p139
    %s142 = sadd.s32 %s141, 1
    %p145 = scmp.eq.s32.totalorder %s13, 1
    %p146 = scmp.ne.s32.totalorder %s141, %s143
    %p147 = scmp.eq.s32.totalorder %s13, 0
    %p148 = por %p146, %p147
    %p149 = scmp.ne.s32.totalorder %s141, %s143
    %p150 = scmp.eq.s32.totalorder %s18, 1
    %p151 = por %p149, %p150
    %p152 = scmp.ne.s32.totalorder %s143, %s144
    %p153 = scmp.eq.s32.totalorder %s18, 0
    %p154 = por %p152, %p153
    %p155 = scmp.ne.s32.totalorder %s143, %s144
    %p156 = scmp.eq.s32.totalorder %s19, 1
    %p157 = por %p155, %p156
    %p159 = scmp.ne.s32.totalorder %s144, %s158
    %p160 = scmp.eq.s32.totalorder %s19, 0
    %p161 = por %p159, %p160
    %s163 = sadd.s32 %s162, 1
    %p166 = scmp.eq.s32.totalorder %s13, 1
    %p167 = scmp.ne.s32.totalorder %s162, %s164
    %p168 = scmp.eq.s32.totalorder %s13, 0
    %p169 = por %p167, %p168
    %p170 = scmp.ne.s32.totalorder %s162, %s164
    %p171 = scmp.eq.s32.totalorder %s18, 1
    %p172 = por %p170, %p171
    %p173 = scmp.ne.s32.totalorder %s164, %s165
    %p174 = scmp.eq.s32.totalorder %s18, 0
    %p175 = por %p173, %p174
    %p176 = scmp.ne.s32.totalorder %s164, %s165
    %p177 = scmp.eq.s32.totalorder %s19, 1
    %p178 = por %p176, %p177
    %p180 = scmp.ne.s32.totalorder %s165, %s179
    %p181 = scmp.eq.s32.totalorder %s19, 0
    %p182 = por %p180, %p181
    %s183 = ssub.s32 %s13, %s20
    %p184 = scmp.eq.s32.totalorder %s183, 0
    %s186 = sadd.s32 %s185, 1
    %s187 = scalar_select %p184, %s185, %s186
    %p190 = pneg %p184
    %p191 = scmp.eq.s32.totalorder %s13, 1
    %p192 = por %p190, %p191
    %p193 = scmp.ne.s32.totalorder %s185, %s188
    %p194 = scmp.eq.s32.totalorder %s13, 0
    %p195 = por %p193, %p194
    %p196 = scmp.ne.s32.totalorder %s185, %s188
    %p197 = scmp.eq.s32.totalorder %s18, 1
    %p198 = por %p196, %p197
    %p199 = scmp.ne.s32.totalorder %s188, %s189
    %p200 = scmp.eq.s32.totalorder %s18, 0
    %p201 = por %p199, %p200
    %p202 = scmp.ne.s32.totalorder %s188, %s189
    %p203 = scmp.eq.s32.totalorder %s19, 1
    %p204 = por %p202, %p203
    %p206 = scmp.ne.s32.totalorder %s189, %s205
    %p207 = scmp.eq.s32.totalorder %s19, 0
    %p208 = por %p206, %p207
    %p209 = scmp.le.s32.totalorder 1, %s13
    %p210 = scmp.lt.s32.totalorder %s13, 3
    %p211 = pnand %p209, %p210
    %p212 = pneg %p211
    // Predicated region
    $region9: #{nvs_tokenizer_forward.1} parent=5 // pred_check
      _
    $region10: #{nvs_tokenizer_forward.1} parent=5 // pred_check_branch
      %214 = sbr.rel (%p211) target = $region12
    $region11: #{nvs_tokenizer_forward.1} parent=5 // pred_region
      %s215 = ssub.s32 %s13, 1
      // Predicated region
      $region13: #{nvs_tokenizer_forward.1} parent=11 // pred_check
        %p216 = pneg %p112
      $region14: #{nvs_tokenizer_forward.1} parent=11 // pred_check_branch
        %218 = sbr.rel (%p216) target = $region16
      $region15: #{nvs_tokenizer_forward.1} parent=11 // pred_region
        _
      $region16: #{nvs_tokenizer_forward.1} parent=11 // pred_fallthru
        _
      // Predicated region
      $region17: #{nvs_tokenizer_forward.1} parent=11 // pred_check
        %p219 = pneg %p133
      $region18: #{nvs_tokenizer_forward.1} parent=11 // pred_check_branch
        %221 = sbr.rel (%p219) target = $region20
      $region19: #{nvs_tokenizer_forward.1} parent=11 // pred_region
        _
      $region20: #{nvs_tokenizer_forward.1} parent=11 // pred_fallthru
        _
      // Predicated region
      $region21: #{nvs_tokenizer_forward.1} parent=11 // pred_check
        %p222 = pneg %p154
      $region22: #{nvs_tokenizer_forward.1} parent=11 // pred_check_branch
        %224 = sbr.rel (%p222) target = $region24
      $region23: #{nvs_tokenizer_forward.1} parent=11 // pred_region
        _
      $region24: #{nvs_tokenizer_forward.1} parent=11 // pred_fallthru
        _
      // Predicated region
      $region25: #{nvs_tokenizer_forward.1} parent=11 // pred_check
        %p225 = pneg %p175
      $region26: #{nvs_tokenizer_forward.1} parent=11 // pred_check_branch
        %227 = sbr.rel (%p225) target = $region28
      $region27: #{nvs_tokenizer_forward.1} parent=11 // pred_region
        _
      $region28: #{nvs_tokenizer_forward.1} parent=11 // pred_fallthru
        _
    $region12: #{nvs_tokenizer_forward.1} parent=5 // pred_fallthru
      _
    %p228 = scmp.lt.s32.totalorder %s13, 2
    // Predicated region
    $region29: #{nvs_tokenizer_forward.1} parent=5 // pred_check
      %p229 = pneg %p228
    $region30: #{nvs_tokenizer_forward.1} parent=5 // pred_check_branch
      %231 = sbr.rel (%p229) target = $region32
    $region31: #{nvs_tokenizer_forward.1} parent=5 // pred_region
      // Predicated region
      $region33: #{nvs_tokenizer_forward.1} parent=31 // pred_check
        %p232 = pneg %p33
      $region34: #{nvs_tokenizer_forward.1} parent=31 // pred_check_branch
        %234 = sbr.rel (%p232) target = $region36
      $region35: #{nvs_tokenizer_forward.1} parent=31 // pred_region
        %p235 = scmp.lt.s32.totalorder %s13, 1
        %s236 = scalar_select %p235, %s13, 1
        %s237 = smul.addr %s236, 2
        %s238 = smul.addr %s237, 4
        %s239 = scalar_lea.vmem %s0, %s238
      $region36: #{nvs_tokenizer_forward.1} parent=31 // pred_fallthru
        _
      // Predicated region
      $region37: #{nvs_tokenizer_forward.1} parent=31 // pred_check
        %p240 = pneg %p59
      $region38: #{nvs_tokenizer_forward.1} parent=31 // pred_check_branch
        %242 = sbr.rel (%p240) target = $region40
      $region39: #{nvs_tokenizer_forward.1} parent=31 // pred_region
        %p243 = scmp.lt.s32.totalorder %s13, 1
        %s244 = scalar_select %p243, %s13, 1
        %s245 = smul.addr %s244, 2
        %s246 = smul.addr %s245, 4
        %s247 = scalar_lea.vmem %s1, %s246
      $region40: #{nvs_tokenizer_forward.1} parent=31 // pred_fallthru
        _
      // Predicated region
      $region41: #{nvs_tokenizer_forward.1} parent=31 // pred_check
        %p248 = pneg %p85
      $region42: #{nvs_tokenizer_forward.1} parent=31 // pred_check_branch
        %250 = sbr.rel (%p248) target = $region44
      $region43: #{nvs_tokenizer_forward.1} parent=31 // pred_region
        %p251 = scmp.lt.s32.totalorder %s13, 1
        %s252 = scalar_select %p251, %s13, 1
        %s253 = smul.addr %s252, 8
        %s254 = scalar_lea.vmem %s2, %s253
      $region44: #{nvs_tokenizer_forward.1} parent=31 // pred_fallthru
        _
    $region32: #{nvs_tokenizer_forward.1} parent=5 // pred_fallthru
      _
    %p255 = scmp.le.s32.totalorder 1, %s13
    %p256 = scmp.lt.s32.totalorder %s13, 3
    %p257 = pnand %p255, %p256
    %p258 = pneg %p257
    // Predicated region
    $region45: #{nvs_tokenizer_forward.1} parent=5 // pred_check
      _
    $region46: #{nvs_tokenizer_forward.1} parent=5 // pred_check_branch
      %260 = sbr.rel (%p257) target = $region48
    $region47: #{nvs_tokenizer_forward.1} parent=5 // pred_region
      %s261 = ssub.s32 %s13, 1
      %p262 = scmp.lt.s32.totalorder %s18, 1
      %s263 = scalar_select %p262, %s18, 1
      %s264 = smul.addr %s263, 2
      %s265 = smul.addr %s264, 4
      %s266 = scalar_lea.vmem %s0, %s265
      %p267 = pneg %p39
      %p268 = pneg %p36
      %p269 = scmp.lt.s32.totalorder %s18, 1
      %s270 = scalar_select %p269, %s18, 1
      %s271 = smul.addr %s270, 2
      %s272 = smul.addr %s271, 4
      %s273 = scalar_lea.vmem %s1, %s272
      %p274 = pneg %p65
      %p275 = pneg %p62
      %p276 = scmp.lt.s32.totalorder %s18, 1
      %s277 = scalar_select %p276, %s18, 1
      %s278 = smul.addr %s277, 8
      %s279 = scalar_lea.vmem %s2, %s278
      %p280 = pneg %p91
      %p281 = pneg %p88
      %p282 = pneg %p112
      %p283 = pneg %p109
      %p284 = pneg %p133
      %p285 = pneg %p130
      %p286 = pneg %p154
      %p287 = pneg %p151
      %p288 = pneg %p175
      %p289 = pneg %p172
      %p290 = pneg %p201
      %p291 = pneg %p198
      %p292 = scmp.lt.s32.totalorder %s18, 1
      %s293 = scalar_select %p292, %s18, 1
      %s294 = smul.addr %s293, 4
      %s295 = scalar_lea.vmem %s7, %s294
      %p296 = scmp.lt.s32.totalorder %s18, 1
      %s297 = scalar_select %p296, %s18, 1
      %s298 = smul.addr %s297, 2
      %s299 = smul.addr %s298, 4
      %s300 = scalar_lea.vmem %s0, %s299
      %p301 = scmp.lt.s32.totalorder %s18, 1
      %s302 = scalar_select %p301, %s18, 1
      %s303 = smul.addr %s302, 2
      %s304 = smul.addr %s303, 4
      %s305 = scalar_lea.vmem %s1, %s304
      %p306 = scmp.lt.s32.totalorder %s18, 1
      %s307 = scalar_select %p306, %s18, 1
      %s308 = smul.addr %s307, 8
      %s309 = scalar_lea.vmem %s2, %s308
      %p310 = scmp.lt.s32.totalorder %s18, 1
      %s311 = scalar_select %p310, %s18, 1
      %s312 = smul.addr %s311, 4
      %s313 = scalar_lea.vmem %s7, %s312
      %v315 = vld [vmem:[%s300] sm:$0xff]
      %v316 = vld [vmem:[%s3] sm:$0xf]
      %v317 = vld [vmem:[%s3 + $0x4] sm:$0xf]
      %v318 = vld [vmem:[%s3 + $0x8] sm:$0xf]
      %v319 = vld [vmem:[%s3 + $0xc] sm:$0xf]
      %v320 = vld [vmem:[%s3 + $0x10] sm:$0xf]
      %v321 = vld [vmem:[%s3 + $0x14] sm:$0xf]
      %v322 = vld [vmem:[%s3 + $0x18] sm:$0xf]
      %v323 = vld [vmem:[%s3 + $0x1c] sm:$0xf]
      %v324 = vld [vmem:[%s3 + $0x20] sm:$0xf]
      %v325 = vld [vmem:[%s3 + $0x24] sm:$0xf]
      %v326 = vld [vmem:[%s3 + $0x28] sm:$0xf]
      %v327 = vld [vmem:[%s3 + $0x2c] sm:$0xf]
      %v328 = vld [vmem:[%s3 + $0x30] sm:$0xf]
      %v329 = vld [vmem:[%s3 + $0x34] sm:$0xf]
      %v330 = vld [vmem:[%s3 + $0x38] sm:$0xf]
      %v331 = vld [vmem:[%s3 + $0x3c] sm:$0xf]
      %v332 = vld [vmem:[%s3 + $0x40] sm:$0xf]
      %v333 = vld [vmem:[%s3 + $0x44] sm:$0xf]
      %v334 = vld [vmem:[%s3 + $0x48] sm:$0xf]
      %v335 = vld [vmem:[%s3 + $0x4c] sm:$0xf]
      %v336 = vld [vmem:[%s3 + $0x50] sm:$0xf]
      %v337 = vld [vmem:[%s3 + $0x54] sm:$0xf]
      %v338 = vld [vmem:[%s3 + $0x58] sm:$0xf]
      %v339 = vld [vmem:[%s3 + $0x5c] sm:$0xf]
      %v340 = vld [vmem:[%s305] sm:$0xff]
      %v341 = vld [vmem:[%s4] sm:$0xf]
      %v342 = vld [vmem:[%s4 + $0x4] sm:$0xf]
      %v343 = vld [vmem:[%s4 + $0x8] sm:$0xf]
      %v344 = vld [vmem:[%s4 + $0xc] sm:$0xf]
      %v345 = vld [vmem:[%s4 + $0x10] sm:$0xf]
      %v346 = vld [vmem:[%s4 + $0x14] sm:$0xf]
      %v347 = vld [vmem:[%s4 + $0x18] sm:$0xf]
      %v348 = vld [vmem:[%s4 + $0x1c] sm:$0xf]
      %v349 = vld [vmem:[%s4 + $0x20] sm:$0xf]
      %v350 = vld [vmem:[%s4 + $0x24] sm:$0xf]
      %v351 = vld [vmem:[%s4 + $0x28] sm:$0xf]
      %v352 = vld [vmem:[%s4 + $0x2c] sm:$0xf]
      %v353 = vld [vmem:[%s4 + $0x30] sm:$0xf]
      %v354 = vld [vmem:[%s4 + $0x34] sm:$0xf]
      %v355 = vld [vmem:[%s4 + $0x38] sm:$0xf]
      %v356 = vld [vmem:[%s4 + $0x3c] sm:$0xf]
      %v357 = vld [vmem:[%s4 + $0x40] sm:$0xf]
      %v358 = vld [vmem:[%s4 + $0x44] sm:$0xf]
      %v359 = vld [vmem:[%s4 + $0x48] sm:$0xf]
      %v360 = vld [vmem:[%s4 + $0x4c] sm:$0xf]
      %v361 = vld [vmem:[%s4 + $0x50] sm:$0xf]
      %v362 = vld [vmem:[%s4 + $0x54] sm:$0xf]
      %v363 = vld [vmem:[%s4 + $0x58] sm:$0xf]
      %v364 = vld [vmem:[%s4 + $0x5c] sm:$0xf]
      %v366 = vunpack.c.l.b16 %v340
      %v367 = vunpack.c.h.b16 %v340
      %v368 = vpack.c.b16 %v366, %v366
      %v369 = vpack.c.b16 %v367, %v367
      %v395 = vunpack.c.l.b16 %v341
      %v396 = vunpack.c.l.b16 %v342
      %v397 = vunpack.c.l.b16 %v343
      %v398 = vunpack.c.l.b16 %v344
      %v399 = vunpack.c.l.b16 %v345
      %v400 = vunpack.c.l.b16 %v346
      %v401 = vunpack.c.l.b16 %v347
      %v402 = vunpack.c.l.b16 %v348
      %v403 = vunpack.c.l.b16 %v349
      %v404 = vunpack.c.l.b16 %v350
      %v405 = vunpack.c.l.b16 %v351
      %v406 = vunpack.c.l.b16 %v352
      %v407 = vunpack.c.l.b16 %v353
      %v408 = vunpack.c.l.b16 %v354
      %v409 = vunpack.c.l.b16 %v355
      %v410 = vunpack.c.l.b16 %v356
      %v411 = vunpack.c.l.b16 %v357
      %v412 = vunpack.c.l.b16 %v358
      %v413 = vunpack.c.l.b16 %v359
      %v414 = vunpack.c.l.b16 %v360
      %v415 = vunpack.c.l.b16 %v361
      %v416 = vunpack.c.l.b16 %v362
      %v417 = vunpack.c.l.b16 %v363
      %v418 = vunpack.c.l.b16 %v364
      %v419 = vpack.c.b16 %v396, %v395
      %v420 = vpack.c.b16 %v398, %v397
      %v421 = vpack.c.b16 %v400, %v399
      %v422 = vpack.c.b16 %v402, %v401
      %v423 = vpack.c.b16 %v404, %v403
      %v424 = vpack.c.b16 %v406, %v405
      %v425 = vpack.c.b16 %v408, %v407
      %v426 = vpack.c.b16 %v410, %v409
      %v427 = vpack.c.b16 %v412, %v411
      %v428 = vpack.c.b16 %v414, %v413
      %v429 = vpack.c.b16 %v416, %v415
      %v430 = vpack.c.b16 %v418, %v417
      %vm443 = vcmask 523264
      %v445 = vsel %vm443, %v369, 0
      %447 = vmatprep.subr.bf16.mxu0 0
      %448 = vmatpush1.bf16.msra.mxu0 %v426
      %449 = vmatprep.subr.bf16.mxu0 0
      %450 = vmatpush1.bf16.msra.mxu0 %v425
      %451 = vmatprep.subr.bf16.mxu0 0
      %452 = vmatpush1.bf16.msra.mxu0 %v424
      %453 = vmatprep.subr.bf16.mxu0 0
      %454 = vmatpush1.bf16.msra.mxu0 %v423
      %455 = vmatprep.subr.bf16.mxu0 0
      %456 = vmatpush1.bf16.msra.mxu0 %v422
      %457 = vmatprep.subr.bf16.mxu0 0
      %458 = vmatpush1.bf16.msra.mxu0 %v421
      %459 = vmatprep.subr.bf16.mxu0 0
      %460 = vmatpush1.bf16.msra.mxu0 %v420
      %461 = vmatprep.subr.bf16.mxu0 0
      %462 = vmatpush1.bf16.msra.mxu0 %v419
      %463 = vmatprep.subr.bf16.mxu0 0
      %464 = vmatpush2.bf16.msra.mxu0 0
      %465 = vmatprep.subr.bf16.mxu0 0
      %466 = vmatpush2.bf16.msra.mxu0 0
      %467 = vmatprep.subr.bf16.mxu0 0
      %468 = vmatpush2.bf16.msra.mxu0 0
      %469 = vmatprep.subr.bf16.mxu0 0
      %470 = vmatpush2.bf16.msra.mxu0 0
      %471 = vmatprep.subr.bf16.mxu0 0
      %472 = vmatpush2.bf16.msra.mxu0 %v430
      %473 = vmatprep.subr.bf16.mxu0 0
      %474 = vmatpush2.bf16.msra.mxu0 %v429
      %475 = vmatprep.subr.bf16.mxu0 0
      %476 = vmatpush2.bf16.msra.mxu0 %v428
      %477 = vmatprep.subr.bf16.mxu0 0
      %478 = vmatpush2.bf16.msra.mxu0 %v427
      %479 = vmatprep.mubr.bf16.mxu0 %v445
      %480 = vmatmul.mubr.bf16.gmra.mxu0 %v368
      %v481 = vpop.f32.mrf.mxu0
      %v482 = vadd.f32 0.0, %v481
      %v483 = vpop.f32.mrf.mxu0
      %v484 = vpop.f32.mrf.mxu0
      %v485 = vpop.f32.mrf.mxu0
      %486 = vdwg.mxu0
      %v488 = vunpack.c.l.b16 %v315
      %v489 = vunpack.c.h.b16 %v315
      %v490 = vpack.c.b16 %v488, %v488
      %v491 = vpack.c.b16 %v489, %v489
      %v517 = vunpack.c.l.b16 %v316
      %v518 = vunpack.c.l.b16 %v317
      %v519 = vunpack.c.l.b16 %v318
      %v520 = vunpack.c.l.b16 %v319
      %v521 = vunpack.c.l.b16 %v320
      %v522 = vunpack.c.l.b16 %v321
      %v523 = vunpack.c.l.b16 %v322
      %v524 = vunpack.c.l.b16 %v323
      %v525 = vunpack.c.l.b16 %v324
      %v526 = vunpack.c.l.b16 %v325
      %v527 = vunpack.c.l.b16 %v326
      %v528 = vunpack.c.l.b16 %v327
      %v529 = vunpack.c.l.b16 %v328
      %v530 = vunpack.c.l.b16 %v329
      %v531 = vunpack.c.l.b16 %v330
      %v532 = vunpack.c.l.b16 %v331
      %v533 = vunpack.c.l.b16 %v332
      %v534 = vunpack.c.l.b16 %v333
      %v535 = vunpack.c.l.b16 %v334
      %v536 = vunpack.c.l.b16 %v335
      %v537 = vunpack.c.l.b16 %v336
      %v538 = vunpack.c.l.b16 %v337
      %v539 = vunpack.c.l.b16 %v338
      %v540 = vunpack.c.l.b16 %v339
      %v541 = vpack.c.b16 %v518, %v517
      %v542 = vpack.c.b16 %v520, %v519
      %v543 = vpack.c.b16 %v522, %v521
      %v544 = vpack.c.b16 %v524, %v523
      %v545 = vpack.c.b16 %v526, %v525
      %v546 = vpack.c.b16 %v528, %v527
      %v547 = vpack.c.b16 %v530, %v529
      %v548 = vpack.c.b16 %v532, %v531
      %v549 = vpack.c.b16 %v534, %v533
      %v550 = vpack.c.b16 %v536, %v535
      %v551 = vpack.c.b16 %v538, %v537
      %v552 = vpack.c.b16 %v540, %v539
      %v566 = vsel %vm443, %v491, 0
      %568 = vmatprep.subr.bf16.mxu0 0
      %569 = vmatpush1.bf16.msra.mxu0 %v548
      %570 = vmatprep.subr.bf16.mxu0 0
      %571 = vmatpush1.bf16.msra.mxu0 %v547
      %572 = vmatprep.subr.bf16.mxu0 0
      %573 = vmatpush1.bf16.msra.mxu0 %v546
      %574 = vmatprep.subr.bf16.mxu0 0
      %575 = vmatpush1.bf16.msra.mxu0 %v545
      %576 = vmatprep.subr.bf16.mxu0 0
      %577 = vmatpush1.bf16.msra.mxu0 %v544
      %578 = vmatprep.subr.bf16.mxu0 0
      %579 = vmatpush1.bf16.msra.mxu0 %v543
      %580 = vmatprep.subr.bf16.mxu0 0
      %581 = vmatpush1.bf16.msra.mxu0 %v542
      %582 = vmatprep.subr.bf16.mxu0 0
      %583 = vmatpush1.bf16.msra.mxu0 %v541
      %584 = vmatprep.subr.bf16.mxu0 0
      %585 = vmatpush2.bf16.msra.mxu0 0
      %586 = vmatprep.subr.bf16.mxu0 0
      %587 = vmatpush2.bf16.msra.mxu0 0
      %588 = vmatprep.subr.bf16.mxu0 0
      %589 = vmatpush2.bf16.msra.mxu0 0
      %590 = vmatprep.subr.bf16.mxu0 0
      %591 = vmatpush2.bf16.msra.mxu0 0
      %592 = vmatprep.subr.bf16.mxu0 0
      %593 = vmatpush2.bf16.msra.mxu0 %v552
      %594 = vmatprep.subr.bf16.mxu0 0
      %595 = vmatpush2.bf16.msra.mxu0 %v551
      %596 = vmatprep.subr.bf16.mxu0 0
      %597 = vmatpush2.bf16.msra.mxu0 %v550
      %598 = vmatprep.subr.bf16.mxu0 0
      %599 = vmatpush2.bf16.msra.mxu0 %v549
      %600 = vmatprep.mubr.bf16.mxu0 %v566
      %601 = vmatmul.mubr.bf16.gmra.mxu0 %v490
      %v602 = vpop.f32.mrf.mxu0
      %v603 = vadd.f32 %v482, %v602
      %v604 = vpop.f32.mrf.mxu0
      %v605 = vpop.f32.mrf.mxu0
      %v606 = vpop.f32.mrf.mxu0
      %607 = vdwg.mxu0
      %v608 = vld [vmem:[%s309] sm:$0xff]
      %v609 = vld [vmem:[%s5] sm:$0xff]
      %v610 = vld [vmem:[%s5 + $0x8] sm:$0xf]
      %vm611 = vcmask 97280
      %v613 = vsel %vm611, %v608, 0
      %vm615 = vcmask 1043456
      %v617 = vsel %vm615, %v610, 0
      %619 = vmatprep.subr.mxu0 0.0
      %620 = vmatpush1.msra.mxu0 0.0
      %621 = vmatprep.subr.mxu0 0.0
      %622 = vmatpush1.msra.mxu0 0.0
      %623 = vmatprep.subr.mxu0 0.0
      %624 = vmatpush1.msra.mxu0 0.0
      %625 = vmatprep.subr.mxu0 0.0
      %626 = vmatpush1.msra.mxu0 0.0
      %627 = vmatprep.subr.mxu0 0.0
      %628 = vmatpush1.msra.mxu0 0.0
      %629 = vmatprep.subr.mxu0 0.0
      %630 = vmatpush1.msra.mxu0 0.0
      %631 = vmatprep.subr.mxu0 0.0
      %632 = vmatpush1.msra.mxu0 0.0
      %633 = vmatprep.subr.mxu0 0.0
      %634 = vmatpush1.msra.mxu0 0.0
      %635 = vmatprep.subr.mxu0 0.0
      %636 = vmatpush1.msra.mxu0 0.0
      %637 = vmatprep.subr.mxu0 0.0
      %638 = vmatpush1.msra.mxu0 0.0
      %639 = vmatprep.subr.mxu0 0.0
      %640 = vmatpush1.msra.mxu0 0.0
      %641 = vmatprep.subr.mxu0 0.0
      %642 = vmatpush1.msra.mxu0 0.0
      %643 = vmatprep.subr.mxu0 0.0
      %644 = vmatpush1.msra.mxu0 0.0
      %645 = vmatprep.subr.mxu0 0.0
      %646 = vmatpush1.msra.mxu0 0.0
      %647 = vmatprep.subr.mxu0 0.0
      %648 = vmatpush1.msra.mxu0 %v617
      %649 = vmatprep.subr.mxu0 0.0
      %650 = vmatpush1.msra.mxu0 %v609
      %651 = vmatprep.subr.mxu0 0.0
      %652 = vmatpush2.msra.mxu0 0.0
      %653 = vmatprep.subr.mxu0 0.0
      %654 = vmatpush2.msra.mxu0 0.0
      %655 = vmatprep.subr.mxu0 0.0
      %656 = vmatpush2.msra.mxu0 0.0
      %657 = vmatprep.subr.mxu0 0.0
      %658 = vmatpush2.msra.mxu0 0.0
      %659 = vmatprep.subr.mxu0 0.0
      %660 = vmatpush2.msra.mxu0 0.0
      %661 = vmatprep.subr.mxu0 0.0
      %662 = vmatpush2.msra.mxu0 0.0
      %663 = vmatprep.subr.mxu0 0.0
      %664 = vmatpush2.msra.mxu0 0.0
      %665 = vmatprep.subr.mxu0 0.0
      %666 = vmatpush2.msra.mxu0 0.0
      %667 = vmatprep.subr.mxu0 0.0
      %668 = vmatpush2.msra.mxu0 0.0
      %669 = vmatprep.subr.mxu0 0.0
      %670 = vmatpush2.msra.mxu0 0.0
      %671 = vmatprep.subr.mxu0 0.0
      %672 = vmatpush2.msra.mxu0 0.0
      %673 = vmatprep.subr.mxu0 0.0
      %674 = vmatpush2.msra.mxu0 0.0
      %675 = vmatprep.subr.mxu0 0.0
      %676 = vmatpush2.msra.mxu0 0.0
      %677 = vmatprep.subr.mxu0 0.0
      %678 = vmatpush2.msra.mxu0 0.0
      %679 = vmatprep.subr.mxu0 0.0
      %680 = vmatpush2.msra.mxu0 0.0
      %681 = vmatprep.subr.mxu0 0.0
      %682 = vmatpush2.msra.mxu0 0.0
      %683 = vmatprep.mubr.f32.mxu0 0.0
      %684 = vmatmul.mubr.f32.gmra.mxu0 %v613
      %v685 = vpop.f32.mrf.mxu0
      %v686 = vadd.f32 0.0, %v685
      %v687 = vpop.f32.mrf.mxu0
      %688 = vdwg.mxu0
      %v689 = vadd.f32 %v603, %v686
      %v690 = vld [vmem:[%s6] sm:$0x1]
      %v692 = vlaneseq
      %v693 = vshrl.u32 %v692, 7
      %v694 = vsub.s32 0, %v693
      %v695 = vrot.slane %v690, %v694
      %v697 = vadd.f32 %v689, %v695
      %v698 = vpack.c.bf16 %v697, %v697
      %699 = vst [vmem:[%s313] sm:$0xf] %v698
      %p700 = scmp.lt.s32.totalorder %s18, 1
      %s701 = scalar_select %p700, %s18, 1
      %s702 = smul.addr %s701, 4
      %s703 = scalar_lea.vmem %s7, %s702
      // Predicated region
      $region49: #{nvs_tokenizer_forward.1} parent=47 // pred_check
        %p704 = pneg %p198
      $region50: #{nvs_tokenizer_forward.1} parent=47 // pred_check_branch
        %706 = sbr.rel (%p704) target = $region52
      $region51: #{nvs_tokenizer_forward.1} parent=47 // pred_region
        _
      $region52: #{nvs_tokenizer_forward.1} parent=47 // pred_fallthru
        _
    $region48: #{nvs_tokenizer_forward.1} parent=5 // pred_fallthru
      _
    %p707 = scmp.le.s32.totalorder 2, %s13
    // Predicated region
    $region53: #{nvs_tokenizer_forward.1} parent=5 // pred_check
      %p708 = pneg %p707
    $region54: #{nvs_tokenizer_forward.1} parent=5 // pred_check_branch
      %710 = sbr.rel (%p708) target = $region56
    $region55: #{nvs_tokenizer_forward.1} parent=5 // pred_region
      %s711 = ssub.s32 %s13, 2
      // Predicated region
      $region57: #{nvs_tokenizer_forward.1} parent=55 // pred_check
        %p712 = pneg %p204
      $region58: #{nvs_tokenizer_forward.1} parent=55 // pred_check_branch
        %714 = sbr.rel (%p712) target = $region60
      $region59: #{nvs_tokenizer_forward.1} parent=55 // pred_region
        %p715 = scmp.lt.s32.totalorder %s19, 1
        %s716 = scalar_select %p715, %s19, 1
        %s717 = smul.addr %s716, 4
        %s718 = scalar_lea.vmem %s7, %s717
      $region60: #{nvs_tokenizer_forward.1} parent=55 // pred_fallthru
        _
    $region56: #{nvs_tokenizer_forward.1} parent=5 // pred_fallthru
      _
  $region6: #{nvs_tokenizer_forward.1} parent=0 // loop_footer
    %s17 = sadd.s32 1, %s13
  $region7: #{nvs_tokenizer_forward.1} parent=0 // loop_footer_branch
    %12 = sbr.rel target = $region3
  $region8: #{nvs_tokenizer_forward.1} parent=0 // loop_exit
    _

</llo_original>
